<compile_context>
chip_gen: v5e
topology: v5e:2x2
jax: 0.10.0
libtpu: 0.0.40
codegen_flags: <defaults>
</compile_context>

<pallas_src>
import jax
import jax.numpy as jnp
import numpy as np
from jax.experimental import pallas as pl
from jax.experimental.pallas import tpu as pltpu


# ----------------------------- Pallas kernel ------------------------------ #

def _pcc_primnet_kernel(x_ref, w1_ref, b1_ref, w2_ref, b2_ref,
                        wo_ref, bo_ref, out_ref):
    """All operands are transposed: features on sublanes, batch on lanes.

    x_ref  : (motor_dim, TB)
    w*_ref : (out_dim, in_dim)   -> h = W^T @ x
    b*_ref : (out_dim, 1)        -> broadcast over the batch lanes
    out_ref: (marker_num*3, TB)  rows = [p0x,p0y,p0z, p1x,...]
    """
    f32 = jnp.float32

    x = x_ref[...]                                             # (motor_dim, TB)

    # --- MLP: every matmul has N = TB lane-dense columns on the MXU ---------
    h = jnp.dot(w1_ref[...], x, preferred_element_type=f32) + b1_ref[...]
    h = jnp.maximum(h, 0.0)                                    # ReLU
    h = jnp.dot(w2_ref[...], h, preferred_element_type=f32) + b2_ref[...]
    h = jnp.maximum(h, 0.0)
    o = jnp.dot(wo_ref[...], h, preferred_element_type=f32) + bo_ref[...]
    # o : (3*marker_num, TB); rows 3s/3s+1/3s+2 = phi/theta/radius of section s

    n_sections = o.shape[0] // 3
    TB = o.shape[1]

    # trig over the full (12, TB) tile: 2 EUP launches, fully packed vregs
    co = jnp.cos(o)
    so = jnp.sin(o)

    zeros = jnp.zeros((1, TB), f32)

    # --- section 0 peeled: running transform starts as identity, so out = T --
    cph = co[0:1, :]
    sph = so[0:1, :]
    cth = co[1:2, :]
    sth = so[1:2, :]
    rr = o[2:3, :]
    py_t = rr * (1.0 - cth)
    pz_t = rr * sth

    # running SE(3) transform (top 3x4 block; bottom row stays [0,0,0,1]),
    # stored as 12 lane-dense rows of shape (1, TB)
    o00, o01, o02, o03 = cph, -sph * cth, -sph * sth, -sph * py_t
    o10, o11, o12, o13 = sph, cph * cth, cph * sth, cph * py_t
    o20, o21, o22, o23 = zeros, -sth, cth, pz_t

    positions = [o03, o13, o23]

    # --- remaining sections (unrolled; marker_num is small & static) --------
    for s in range(1, n_sections):
        cph = co[3 * s: 3 * s + 1, :]
        sph = so[3 * s: 3 * s + 1, :]
        cth = co[3 * s + 1: 3 * s + 2, :]
        sth = so[3 * s + 1: 3 * s + 2, :]
        rr = o[3 * s + 2: 3 * s + 3, :]
        py_t = rr * (1.0 - cth)
        pz_t = rr * sth

        # T = T1 @ T2 expanded elementwise over the batch lanes:
        # [ cph  -sph*cth  -sph*sth  -sph*py_t ]
        # [ sph   cph*cth   cph*sth   cph*py_t ]
        # [  0     -sth       cth       pz_t   ]
        # [  0      0          0         1     ]
        t00, t01, t02, t03 = cph, -sph * cth, -sph * sth, -sph * py_t
        t10, t11, t12, t13 = sph, cph * cth, cph * sth, cph * py_t

        n00 = o00 * t00 + o01 * t10
        n01 = o00 * t01 + o01 * t11 - o02 * sth
        n02 = o00 * t02 + o01 * t12 + o02 * cth
        n03 = o00 * t03 + o01 * t13 + o02 * pz_t + o03

        n10 = o10 * t00 + o11 * t10
        n11 = o10 * t01 + o11 * t11 - o12 * sth
        n12 = o10 * t02 + o11 * t12 + o12 * cth
        n13 = o10 * t03 + o11 * t13 + o12 * pz_t + o13

        n20 = o20 * t00 + o21 * t10
        n21 = o20 * t01 + o21 * t11 - o22 * sth
        n22 = o20 * t02 + o21 * t12 + o22 * cth
        n23 = o20 * t03 + o21 * t13 + o22 * pz_t + o23

        o00, o01, o02, o03 = n00, n01, n02, n03
        o10, o11, o12, o13 = n10, n11, n12, n13
        o20, o21, o22, o23 = n20, n21, n22, n23

        positions.extend([o03, o13, o23])

    # single unmasked, lane-dense store of the whole (12, TB) output tile
    out_ref[...] = jnp.concatenate(positions, axis=0)


# ------------------------------- wrapper ----------------------------------- #

def _round_up(x, m):
    return -(-x // m) * m


def pcc_primnet_forward(motor_control, params, marker_num):
    B, motor_dim = motor_control.shape
    out_rows = marker_num * 3
    f32 = jnp.float32

    # Fold (x - mean)/std into the first layer (trace-time, free):
    #   ((x - mean)/std) @ w1 + b1 == x @ (w1/std[:,None]) + (b1 - (mean/std)@w1)
    # NOTE: assumes motor_std strictly nonzero (same as the original divide).
    inv_std = 1.0 / params["motor_std"]                          # (1, motor_dim)
    w1_eff = (params["w1"] * inv_std.reshape(-1, 1)).astype(f32)  # (motor_dim, h0)
    b1_eff = (params["b1"] - (params["motor_mean"] * inv_std) @ params["w1"]).astype(f32)

    # Pre-transpose everything: batch on the lane axis inside the kernel.
    w1_t = w1_eff.T                                              # (h0, motor_dim)
    b1_t = b1_eff.T                                              # (h0, 1)
    w2_t = params["w2"].astype(f32).T                            # (h1, h0)
    b2_t = params["b2"].astype(f32).T                            # (h1, 1)
    wo_t = params["wo"].astype(f32).T                            # (12, h1)
    bo_t = params["bo"].astype(f32).T                            # (12, 1)

    # Batch tile = lane extent. 128 keeps every chain value in one packed vreg;
    # 256 for large batches cuts per-step overhead while still giving >=2 grid
    # blocks (so v7x can shard batch blocks across its two TensorCores).
    # VMEM is a non-issue at these sizes on any generation.
    TB = 256 if B > 256 else 128
    B_pad = _round_up(B, TB)

    mc_t = motor_control.astype(f32).T                           # (motor_dim, B)
    if B_pad != B:
        mc_t = jnp.pad(mc_t, ((0, 0), (0, B_pad - B)))

    weights = [w1_t, b1_t, w2_t, b2_t, wo_t, bo_t]

    in_specs = [pl.BlockSpec((motor_dim, TB), lambda i: (0, i))]
    # weights/biases stay resident across batch blocks (constant index_map)
    in_specs += [pl.BlockSpec(w.shape, lambda i: (0, 0)) for w in weights]

    flat = pl.pallas_call(
        _pcc_primnet_kernel,
        out_shape=jax.ShapeDtypeStruct((out_rows, B_pad), f32),
        grid=(B_pad // TB,),
        in_specs=in_specs,
        out_specs=pl.BlockSpec((out_rows, TB), lambda i: (0, i)),
        compiler_params=pltpu.CompilerParams(
            dimension_semantics=("parallel",)),
    )(mc_t, *weights)

    # (12, B_pad) -> (B, marker_num, 3, 1)  (matches torch t2p + stack)
    return flat[:, :B].T.reshape(B, marker_num, 3, 1)


# --------------------------- pure-JAX reference ----------------------------- #

def reference_forward(motor_control, params, marker_num):
    x = (motor_control - params["motor_mean"]) / params["motor_std"]
    h = jax.nn.relu(x @ params["w1"] + params["b1"])
    h = jax.nn.relu(h @ params["w2"] + params["b2"])
    o = (h @ params["wo"] + params["bo"]).reshape(-1, marker_num, 3)
    phi, theta, radius = o[..., 0], o[..., 1], o[..., 2]
    B = o.shape[0]

    out = jnp.tile(jnp.eye(4, dtype=jnp.float32), (B, 1, 1))
    positions = []
    for s in range(marker_num):
        ph, th, rr = phi[:, s], theta[:, s], radius[:, s]
        cph, sph = jnp.cos(ph), jnp.sin(ph)
        cth, sth = jnp.cos(th), jnp.sin(th)
        z = jnp.zeros_like(ph)
        one = jnp.ones_like(ph)

        T1 = jnp.stack([
            jnp.stack([cph, -sph, z, z], -1),
            jnp.stack([sph, cph, z, z], -1),
            jnp.stack([z, z, one, z], -1),
            jnp.stack([z, z, z, one], -1)], -2)
        T2 = jnp.stack([
            jnp.stack([one, z, z, z], -1),
            jnp.stack([z, cth, sth, rr * (1.0 - cth)], -1),
            jnp.stack([z, -sth, cth, rr * sth], -1),
            jnp.stack([z, z, z, one], -1)], -2)
        out = out @ (T1 @ T2)
        positions.append(out[:, :3, 3])
    return jnp.stack(positions, axis=1)[..., None]


# --------------------------------- main ------------------------------------ #

if __name__ == "__main__":
    # small, module-consistent shapes
    B = 8            # batch
    MOTOR_DIM = 4    # args.motor_dim
    HDIM = (32, 32)  # args.hdim
    MARKER_NUM = 4   # args.marker_num (== number of PCC sections)

    key = jax.random.PRNGKey(0)
    k_in, k1, k2, k3, kb1, kb2, kb3 = jax.random.split(key, 7)

    params = {
        "motor_mean": jnp.zeros((1, MOTOR_DIM), jnp.float32),
        "motor_std": jnp.ones((1, MOTOR_DIM), jnp.float32),
        "w1": 0.3 * jax.random.normal(k1, (MOTOR_DIM, HDIM[0]), jnp.float32),
        "b1": 0.1 * jax.random.normal(kb1, (1, HDIM[0]), jnp.float32),
        "w2": 0.2 * jax.random.normal(k2, (HDIM[0], HDIM[1]), jnp.float32),
        "b2": 0.1 * jax.random.normal(kb2, (1, HDIM[1]), jnp.float32),
        "wo": 0.2 * jax.random.normal(k3, (HDIM[1], MARKER_NUM * 3), jnp.float32),
        "bo": 0.1 * jax.random.normal(kb3, (1, MARKER_NUM * 3), jnp.float32),
    }

    motor_control = jax.random.normal(k_in, (B, MOTOR_DIM), jnp.float32)

    out = pcc_primnet_forward(motor_control, params, MARKER_NUM)
    out = jax.block_until_ready(out)

    ref = jax.block_until_ready(reference_forward(motor_control, params, MARKER_NUM))

    assert out.shape == (B, MARKER_NUM, 3, 1)
    assert np.allclose(np.asarray(out), np.asarray(ref), rtol=2e-3, atol=2e-3)

    print("KERNEL_OK")
</pallas_src>

<mosaic_0001>
module attributes {stable_mosaic.version = 11 : i64} {
  func.func @_pcc_primnet_kernel(%arg0: i32, %arg1: memref<4x128xf32, #tpu.memory_space<vmem>>, %arg2: memref<32x4xf32, #tpu.memory_space<vmem>>, %arg3: memref<32x1xf32, #tpu.memory_space<vmem>>, %arg4: memref<32x32xf32, #tpu.memory_space<vmem>>, %arg5: memref<32x1xf32, #tpu.memory_space<vmem>>, %arg6: memref<12x32xf32, #tpu.memory_space<vmem>>, %arg7: memref<12x1xf32, #tpu.memory_space<vmem>>, %arg8: memref<12x128xf32, #tpu.memory_space<vmem>>) attributes {dimension_semantics = [#tpu.dimension_semantics<parallel>], iteration_bounds = array<i64: 1>, scalar_prefetch = 0 : i64, scratch_operands = 0 : i64, tpu.core_type = #tpu.core_type<tc>, window_params = [{transform_indices = @transform_0, window_bounds = array<i64: 4, 128>}, {pipeline_mode = #tpu.pipeline_mode<synchronous>, transform_indices = @transform_1, window_bounds = array<i64: 32, 4>}, {pipeline_mode = #tpu.pipeline_mode<synchronous>, transform_indices = @transform_2, window_bounds = array<i64: 32, 1>}, {pipeline_mode = #tpu.pipeline_mode<synchronous>, transform_indices = @transform_3, window_bounds = array<i64: 32, 32>}, {pipeline_mode = #tpu.pipeline_mode<synchronous>, transform_indices = @transform_4, window_bounds = array<i64: 32, 1>}, {pipeline_mode = #tpu.pipeline_mode<synchronous>, transform_indices = @transform_5, window_bounds = array<i64: 12, 32>}, {pipeline_mode = #tpu.pipeline_mode<synchronous>, transform_indices = @transform_6, window_bounds = array<i64: 12, 1>}, {transform_indices = @transform_7, window_bounds = array<i64: 12, 128>}]} {
    %c0 = arith.constant 0 : index
    %c0_0 = arith.constant 0 : index
    %0 = vector.load %arg1[%c0, %c0_0] : memref<4x128xf32, #tpu.memory_space<vmem>>, vector<4x128xf32>
    %c0_1 = arith.constant 0 : index
    %c0_2 = arith.constant 0 : index
    %1 = vector.load %arg2[%c0_1, %c0_2] : memref<32x4xf32, #tpu.memory_space<vmem>>, vector<32x4xf32>
    %cst = arith.constant dense<0.000000e+00> : vector<32x128xf32>
    %2 = tpu.matmul %1, %0, %cst {dimension_numbers = #tpu.dot_dimension_numbers<[1], [0], [0], [1], [0, 0, 1, 1], [], []>} : vector<32x4xf32>, vector<4x128xf32>, vector<32x128xf32> -> vector<32x128xf32>
    %c0_3 = arith.constant 0 : index
    %c0_4 = arith.constant 0 : index
    %3 = vector.load %arg3[%c0_3, %c0_4] : memref<32x1xf32, #tpu.memory_space<vmem>>, vector<32x1xf32>
    %4 = vector.broadcast %3 : vector<32x1xf32> to vector<32x128xf32>
    %5 = arith.addf %2, %4 : vector<32x128xf32>
    %cst_5 = arith.constant 0.000000e+00 : f32
    %6 = vector.broadcast %cst_5 : f32 to vector<32x128xf32>
    %7 = arith.maximumf %5, %6 : vector<32x128xf32>
    %c0_6 = arith.constant 0 : index
    %c0_7 = arith.constant 0 : index
    %8 = vector.load %arg4[%c0_6, %c0_7] : memref<32x32xf32, #tpu.memory_space<vmem>>, vector<32x32xf32>
    %cst_8 = arith.constant dense<0.000000e+00> : vector<32x128xf32>
    %9 = tpu.matmul %8, %7, %cst_8 {dimension_numbers = #tpu.dot_dimension_numbers<[1], [0], [0], [1], [0, 0, 1, 1], [], []>} : vector<32x32xf32>, vector<32x128xf32>, vector<32x128xf32> -> vector<32x128xf32>
    %c0_9 = arith.constant 0 : index
    %c0_10 = arith.constant 0 : index
    %10 = vector.load %arg5[%c0_9, %c0_10] : memref<32x1xf32, #tpu.memory_space<vmem>>, vector<32x1xf32>
    %11 = vector.broadcast %10 : vector<32x1xf32> to vector<32x128xf32>
    %12 = arith.addf %9, %11 : vector<32x128xf32>
    %cst_11 = arith.constant 0.000000e+00 : f32
    %13 = vector.broadcast %cst_11 : f32 to vector<32x128xf32>
    %14 = arith.maximumf %12, %13 : vector<32x128xf32>
    %c0_12 = arith.constant 0 : index
    %c0_13 = arith.constant 0 : index
    %15 = vector.load %arg6[%c0_12, %c0_13] : memref<12x32xf32, #tpu.memory_space<vmem>>, vector<12x32xf32>
    %cst_14 = arith.constant dense<0.000000e+00> : vector<12x128xf32>
    %16 = tpu.matmul %15, %14, %cst_14 {dimension_numbers = #tpu.dot_dimension_numbers<[1], [0], [0], [1], [0, 0, 1, 1], [], []>} : vector<12x32xf32>, vector<32x128xf32>, vector<12x128xf32> -> vector<12x128xf32>
    %c0_15 = arith.constant 0 : index
    %c0_16 = arith.constant 0 : index
    %17 = vector.load %arg7[%c0_15, %c0_16] : memref<12x1xf32, #tpu.memory_space<vmem>>, vector<12x1xf32>
    %18 = vector.broadcast %17 : vector<12x1xf32> to vector<12x128xf32>
    %19 = arith.addf %16, %18 : vector<12x128xf32>
    %20 = math.cos %19 : vector<12x128xf32>
    %21 = math.sin %19 : vector<12x128xf32>
    %cst_17 = arith.constant 0.000000e+00 : f32
    %22 = vector.broadcast %cst_17 : f32 to vector<1x128xf32>
    %23 = vector.extract_strided_slice %20 {offsets = [0, 0], sizes = [1, 128], strides = [1, 1]} : vector<12x128xf32> to vector<1x128xf32>
    %24 = vector.extract_strided_slice %21 {offsets = [0, 0], sizes = [1, 128], strides = [1, 1]} : vector<12x128xf32> to vector<1x128xf32>
    %25 = vector.extract_strided_slice %20 {offsets = [1, 0], sizes = [1, 128], strides = [1, 1]} : vector<12x128xf32> to vector<1x128xf32>
    %26 = vector.extract_strided_slice %21 {offsets = [1, 0], sizes = [1, 128], strides = [1, 1]} : vector<12x128xf32> to vector<1x128xf32>
    %27 = vector.extract_strided_slice %19 {offsets = [2, 0], sizes = [1, 128], strides = [1, 1]} : vector<12x128xf32> to vector<1x128xf32>
    %cst_18 = arith.constant 1.000000e+00 : f32
    %28 = vector.broadcast %cst_18 : f32 to vector<1x128xf32>
    %29 = arith.subf %28, %25 : vector<1x128xf32>
    %30 = arith.mulf %27, %29 : vector<1x128xf32>
    %31 = arith.mulf %27, %26 : vector<1x128xf32>
    %cst_19 = arith.constant 0.000000e+00 : f32
    %32 = vector.broadcast %cst_19 : f32 to vector<1x128xf32>
    %33 = arith.subf %32, %24 : vector<1x128xf32>
    %34 = arith.mulf %33, %25 : vector<1x128xf32>
    %cst_20 = arith.constant 0.000000e+00 : f32
    %35 = vector.broadcast %cst_20 : f32 to vector<1x128xf32>
    %36 = arith.subf %35, %24 : vector<1x128xf32>
    %37 = arith.mulf %36, %26 : vector<1x128xf32>
    %cst_21 = arith.constant 0.000000e+00 : f32
    %38 = vector.broadcast %cst_21 : f32 to vector<1x128xf32>
    %39 = arith.subf %38, %24 : vector<1x128xf32>
    %40 = arith.mulf %39, %30 : vector<1x128xf32>
    %41 = arith.mulf %23, %25 : vector<1x128xf32>
    %42 = arith.mulf %23, %26 : vector<1x128xf32>
    %43 = arith.mulf %23, %30 : vector<1x128xf32>
    %cst_22 = arith.constant 0.000000e+00 : f32
    %44 = vector.broadcast %cst_22 : f32 to vector<1x128xf32>
    %45 = arith.subf %44, %26 : vector<1x128xf32>
    %46 = vector.extract_strided_slice %20 {offsets = [3, 0], sizes = [1, 128], strides = [1, 1]} : vector<12x128xf32> to vector<1x128xf32>
    %47 = vector.extract_strided_slice %21 {offsets = [3, 0], sizes = [1, 128], strides = [1, 1]} : vector<12x128xf32> to vector<1x128xf32>
    %48 = vector.extract_strided_slice %20 {offsets = [4, 0], sizes = [1, 128], strides = [1, 1]} : vector<12x128xf32> to vector<1x128xf32>
    %49 = vector.extract_strided_slice %21 {offsets = [4, 0], sizes = [1, 128], strides = [1, 1]} : vector<12x128xf32> to vector<1x128xf32>
    %50 = vector.extract_strided_slice %19 {offsets = [5, 0], sizes = [1, 128], strides = [1, 1]} : vector<12x128xf32> to vector<1x128xf32>
    %cst_23 = arith.constant 1.000000e+00 : f32
    %51 = vector.broadcast %cst_23 : f32 to vector<1x128xf32>
    %52 = arith.subf %51, %48 : vector<1x128xf32>
    %53 = arith.mulf %50, %52 : vector<1x128xf32>
    %54 = arith.mulf %50, %49 : vector<1x128xf32>
    %cst_24 = arith.constant 0.000000e+00 : f32
    %55 = vector.broadcast %cst_24 : f32 to vector<1x128xf32>
    %56 = arith.subf %55, %47 : vector<1x128xf32>
    %57 = arith.mulf %56, %48 : vector<1x128xf32>
    %cst_25 = arith.constant 0.000000e+00 : f32
    %58 = vector.broadcast %cst_25 : f32 to vector<1x128xf32>
    %59 = arith.subf %58, %47 : vector<1x128xf32>
    %60 = arith.mulf %59, %49 : vector<1x128xf32>
    %cst_26 = arith.constant 0.000000e+00 : f32
    %61 = vector.broadcast %cst_26 : f32 to vector<1x128xf32>
    %62 = arith.subf %61, %47 : vector<1x128xf32>
    %63 = arith.mulf %62, %53 : vector<1x128xf32>
    %64 = arith.mulf %46, %48 : vector<1x128xf32>
    %65 = arith.mulf %46, %49 : vector<1x128xf32>
    %66 = arith.mulf %46, %53 : vector<1x128xf32>
    %67 = arith.mulf %23, %46 : vector<1x128xf32>
    %68 = arith.mulf %34, %47 : vector<1x128xf32>
    %69 = arith.addf %67, %68 : vector<1x128xf32>
    %70 = arith.mulf %23, %57 : vector<1x128xf32>
    %71 = arith.mulf %34, %64 : vector<1x128xf32>
    %72 = arith.addf %70, %71 : vector<1x128xf32>
    %73 = arith.mulf %37, %49 : vector<1x128xf32>
    %74 = arith.subf %72, %73 : vector<1x128xf32>
    %75 = arith.mulf %23, %60 : vector<1x128xf32>
    %76 = arith.mulf %34, %65 : vector<1x128xf32>
    %77 = arith.addf %75, %76 : vector<1x128xf32>
    %78 = arith.mulf %37, %48 : vector<1x128xf32>
    %79 = arith.addf %77, %78 : vector<1x128xf32>
    %80 = arith.mulf %23, %63 : vector<1x128xf32>
    %81 = arith.mulf %34, %66 : vector<1x128xf32>
    %82 = arith.addf %80, %81 : vector<1x128xf32>
    %83 = arith.mulf %37, %54 : vector<1x128xf32>
    %84 = arith.addf %82, %83 : vector<1x128xf32>
    %85 = arith.addf %84, %40 : vector<1x128xf32>
    %86 = arith.mulf %24, %46 : vector<1x128xf32>
    %87 = arith.mulf %41, %47 : vector<1x128xf32>
    %88 = arith.addf %86, %87 : vector<1x128xf32>
    %89 = arith.mulf %24, %57 : vector<1x128xf32>
    %90 = arith.mulf %41, %64 : vector<1x128xf32>
    %91 = arith.addf %89, %90 : vector<1x128xf32>
    %92 = arith.mulf %42, %49 : vector<1x128xf32>
    %93 = arith.subf %91, %92 : vector<1x128xf32>
    %94 = arith.mulf %24, %60 : vector<1x128xf32>
    %95 = arith.mulf %41, %65 : vector<1x128xf32>
    %96 = arith.addf %94, %95 : vector<1x128xf32>
    %97 = arith.mulf %42, %48 : vector<1x128xf32>
    %98 = arith.addf %96, %97 : vector<1x128xf32>
    %99 = arith.mulf %24, %63 : vector<1x128xf32>
    %100 = arith.mulf %41, %66 : vector<1x128xf32>
    %101 = arith.addf %99, %100 : vector<1x128xf32>
    %102 = arith.mulf %42, %54 : vector<1x128xf32>
    %103 = arith.addf %101, %102 : vector<1x128xf32>
    %104 = arith.addf %103, %43 : vector<1x128xf32>
    %105 = arith.mulf %22, %46 : vector<1x128xf32>
    %106 = arith.mulf %45, %47 : vector<1x128xf32>
    %107 = arith.addf %105, %106 : vector<1x128xf32>
    %108 = arith.mulf %22, %57 : vector<1x128xf32>
    %109 = arith.mulf %45, %64 : vector<1x128xf32>
    %110 = arith.addf %108, %109 : vector<1x128xf32>
    %111 = arith.mulf %25, %49 : vector<1x128xf32>
    %112 = arith.subf %110, %111 : vector<1x128xf32>
    %113 = arith.mulf %22, %60 : vector<1x128xf32>
    %114 = arith.mulf %45, %65 : vector<1x128xf32>
    %115 = arith.addf %113, %114 : vector<1x128xf32>
    %116 = arith.mulf %25, %48 : vector<1x128xf32>
    %117 = arith.addf %115, %116 : vector<1x128xf32>
    %118 = arith.mulf %22, %63 : vector<1x128xf32>
    %119 = arith.mulf %45, %66 : vector<1x128xf32>
    %120 = arith.addf %118, %119 : vector<1x128xf32>
    %121 = arith.mulf %25, %54 : vector<1x128xf32>
    %122 = arith.addf %120, %121 : vector<1x128xf32>
    %123 = arith.addf %122, %31 : vector<1x128xf32>
    %124 = vector.extract_strided_slice %20 {offsets = [6, 0], sizes = [1, 128], strides = [1, 1]} : vector<12x128xf32> to vector<1x128xf32>
    %125 = vector.extract_strided_slice %21 {offsets = [6, 0], sizes = [1, 128], strides = [1, 1]} : vector<12x128xf32> to vector<1x128xf32>
    %126 = vector.extract_strided_slice %20 {offsets = [7, 0], sizes = [1, 128], strides = [1, 1]} : vector<12x128xf32> to vector<1x128xf32>
    %127 = vector.extract_strided_slice %21 {offsets = [7, 0], sizes = [1, 128], strides = [1, 1]} : vector<12x128xf32> to vector<1x128xf32>
    %128 = vector.extract_strided_slice %19 {offsets = [8, 0], sizes = [1, 128], strides = [1, 1]} : vector<12x128xf32> to vector<1x128xf32>
    %cst_27 = arith.constant 1.000000e+00 : f32
    %129 = vector.broadcast %cst_27 : f32 to vector<1x128xf32>
    %130 = arith.subf %129, %126 : vector<1x128xf32>
    %131 = arith.mulf %128, %130 : vector<1x128xf32>
    %132 = arith.mulf %128, %127 : vector<1x128xf32>
    %cst_28 = arith.constant 0.000000e+00 : f32
    %133 = vector.broadcast %cst_28 : f32 to vector<1x128xf32>
    %134 = arith.subf %133, %125 : vector<1x128xf32>
    %135 = arith.mulf %134, %126 : vector<1x128xf32>
    %cst_29 = arith.constant 0.000000e+00 : f32
    %136 = vector.broadcast %cst_29 : f32 to vector<1x128xf32>
    %137 = arith.subf %136, %125 : vector<1x128xf32>
    %138 = arith.mulf %137, %127 : vector<1x128xf32>
    %cst_30 = arith.constant 0.000000e+00 : f32
    %139 = vector.broadcast %cst_30 : f32 to vector<1x128xf32>
    %140 = arith.subf %139, %125 : vector<1x128xf32>
    %141 = arith.mulf %140, %131 : vector<1x128xf32>
    %142 = arith.mulf %124, %126 : vector<1x128xf32>
    %143 = arith.mulf %124, %127 : vector<1x128xf32>
    %144 = arith.mulf %124, %131 : vector<1x128xf32>
    %145 = arith.mulf %69, %124 : vector<1x128xf32>
    %146 = arith.mulf %74, %125 : vector<1x128xf32>
    %147 = arith.addf %145, %146 : vector<1x128xf32>
    %148 = arith.mulf %69, %135 : vector<1x128xf32>
    %149 = arith.mulf %74, %142 : vector<1x128xf32>
    %150 = arith.addf %148, %149 : vector<1x128xf32>
    %151 = arith.mulf %79, %127 : vector<1x128xf32>
    %152 = arith.subf %150, %151 : vector<1x128xf32>
    %153 = arith.mulf %69, %138 : vector<1x128xf32>
    %154 = arith.mulf %74, %143 : vector<1x128xf32>
    %155 = arith.addf %153, %154 : vector<1x128xf32>
    %156 = arith.mulf %79, %126 : vector<1x128xf32>
    %157 = arith.addf %155, %156 : vector<1x128xf32>
    %158 = arith.mulf %69, %141 : vector<1x128xf32>
    %159 = arith.mulf %74, %144 : vector<1x128xf32>
    %160 = arith.addf %158, %159 : vector<1x128xf32>
    %161 = arith.mulf %79, %132 : vector<1x128xf32>
    %162 = arith.addf %160, %161 : vector<1x128xf32>
    %163 = arith.addf %162, %85 : vector<1x128xf32>
    %164 = arith.mulf %88, %124 : vector<1x128xf32>
    %165 = arith.mulf %93, %125 : vector<1x128xf32>
    %166 = arith.addf %164, %165 : vector<1x128xf32>
    %167 = arith.mulf %88, %135 : vector<1x128xf32>
    %168 = arith.mulf %93, %142 : vector<1x128xf32>
    %169 = arith.addf %167, %168 : vector<1x128xf32>
    %170 = arith.mulf %98, %127 : vector<1x128xf32>
    %171 = arith.subf %169, %170 : vector<1x128xf32>
    %172 = arith.mulf %88, %138 : vector<1x128xf32>
    %173 = arith.mulf %93, %143 : vector<1x128xf32>
    %174 = arith.addf %172, %173 : vector<1x128xf32>
    %175 = arith.mulf %98, %126 : vector<1x128xf32>
    %176 = arith.addf %174, %175 : vector<1x128xf32>
    %177 = arith.mulf %88, %141 : vector<1x128xf32>
    %178 = arith.mulf %93, %144 : vector<1x128xf32>
    %179 = arith.addf %177, %178 : vector<1x128xf32>
    %180 = arith.mulf %98, %132 : vector<1x128xf32>
    %181 = arith.addf %179, %180 : vector<1x128xf32>
    %182 = arith.addf %181, %104 : vector<1x128xf32>
    %183 = arith.mulf %107, %124 : vector<1x128xf32>
    %184 = arith.mulf %112, %125 : vector<1x128xf32>
    %185 = arith.addf %183, %184 : vector<1x128xf32>
    %186 = arith.mulf %107, %135 : vector<1x128xf32>
    %187 = arith.mulf %112, %142 : vector<1x128xf32>
    %188 = arith.addf %186, %187 : vector<1x128xf32>
    %189 = arith.mulf %117, %127 : vector<1x128xf32>
    %190 = arith.subf %188, %189 : vector<1x128xf32>
    %191 = arith.mulf %107, %138 : vector<1x128xf32>
    %192 = arith.mulf %112, %143 : vector<1x128xf32>
    %193 = arith.addf %191, %192 : vector<1x128xf32>
    %194 = arith.mulf %117, %126 : vector<1x128xf32>
    %195 = arith.addf %193, %194 : vector<1x128xf32>
    %196 = arith.mulf %107, %141 : vector<1x128xf32>
    %197 = arith.mulf %112, %144 : vector<1x128xf32>
    %198 = arith.addf %196, %197 : vector<1x128xf32>
    %199 = arith.mulf %117, %132 : vector<1x128xf32>
    %200 = arith.addf %198, %199 : vector<1x128xf32>
    %201 = arith.addf %200, %123 : vector<1x128xf32>
    %202 = vector.extract_strided_slice %20 {offsets = [9, 0], sizes = [1, 128], strides = [1, 1]} : vector<12x128xf32> to vector<1x128xf32>
    %203 = vector.extract_strided_slice %21 {offsets = [9, 0], sizes = [1, 128], strides = [1, 1]} : vector<12x128xf32> to vector<1x128xf32>
    %204 = vector.extract_strided_slice %20 {offsets = [10, 0], sizes = [1, 128], strides = [1, 1]} : vector<12x128xf32> to vector<1x128xf32>
    %205 = vector.extract_strided_slice %21 {offsets = [10, 0], sizes = [1, 128], strides = [1, 1]} : vector<12x128xf32> to vector<1x128xf32>
    %206 = vector.extract_strided_slice %19 {offsets = [11, 0], sizes = [1, 128], strides = [1, 1]} : vector<12x128xf32> to vector<1x128xf32>
    %cst_31 = arith.constant 1.000000e+00 : f32
    %207 = vector.broadcast %cst_31 : f32 to vector<1x128xf32>
    %208 = arith.subf %207, %204 : vector<1x128xf32>
    %209 = arith.mulf %206, %208 : vector<1x128xf32>
    %210 = arith.mulf %206, %205 : vector<1x128xf32>
    %cst_32 = arith.constant 0.000000e+00 : f32
    %211 = vector.broadcast %cst_32 : f32 to vector<1x128xf32>
    %212 = arith.subf %211, %203 : vector<1x128xf32>
    %213 = arith.mulf %212, %209 : vector<1x128xf32>
    %214 = arith.mulf %202, %209 : vector<1x128xf32>
    %215 = arith.mulf %147, %213 : vector<1x128xf32>
    %216 = arith.mulf %152, %214 : vector<1x128xf32>
    %217 = arith.addf %215, %216 : vector<1x128xf32>
    %218 = arith.mulf %157, %210 : vector<1x128xf32>
    %219 = arith.addf %217, %218 : vector<1x128xf32>
    %220 = arith.addf %219, %163 : vector<1x128xf32>
    %221 = arith.mulf %166, %213 : vector<1x128xf32>
    %222 = arith.mulf %171, %214 : vector<1x128xf32>
    %223 = arith.addf %221, %222 : vector<1x128xf32>
    %224 = arith.mulf %176, %210 : vector<1x128xf32>
    %225 = arith.addf %223, %224 : vector<1x128xf32>
    %226 = arith.addf %225, %182 : vector<1x128xf32>
    %227 = arith.mulf %185, %213 : vector<1x128xf32>
    %228 = arith.mulf %190, %214 : vector<1x128xf32>
    %229 = arith.addf %227, %228 : vector<1x128xf32>
    %230 = arith.mulf %195, %210 : vector<1x128xf32>
    %231 = arith.addf %229, %230 : vector<1x128xf32>
    %232 = arith.addf %231, %201 : vector<1x128xf32>
    %233 = tpu.concatenate %40, %43, %31, %85, %104, %123, %163, %182, %201, %220, %226, %232 in 0 : vector<1x128xf32>, vector<1x128xf32>, vector<1x128xf32>, vector<1x128xf32>, vector<1x128xf32>, vector<1x128xf32>, vector<1x128xf32>, vector<1x128xf32>, vector<1x128xf32>, vector<1x128xf32>, vector<1x128xf32>, vector<1x128xf32> -> vector<12x128xf32>
    %c0_33 = arith.constant 0 : index
    %c0_34 = arith.constant 0 : index
    %234 = vector.load %arg8[%c0_33, %c0_34] : memref<12x128xf32, #tpu.memory_space<vmem>>, vector<12x128xf32>
    tpu.vector_store %arg8[%c0_33, %c0_34], %233 {strides = array<i32>} : memref<12x128xf32, #tpu.memory_space<vmem>>, vector<12x128xf32>,
    return
  }
  func.func @transform_0(%arg0: i32) -> (i32, i32) {
    %c0_i32 = arith.constant 0 : i32
    %c0_i32_0 = arith.constant 0 : i32
    return %c0_i32, %arg0 : i32, i32
  }
  func.func @transform_1(%arg0: i32) -> (i32, i32) {
    %c0_i32 = arith.constant 0 : i32
    %c0_i32_0 = arith.constant 0 : i32
    %c0_i32_1 = arith.constant 0 : i32
    return %c0_i32, %c0_i32_0 : i32, i32
  }
  func.func @transform_2(%arg0: i32) -> (i32, i32) {
    %c0_i32 = arith.constant 0 : i32
    %c0_i32_0 = arith.constant 0 : i32
    %c0_i32_1 = arith.constant 0 : i32
    return %c0_i32, %c0_i32_0 : i32, i32
  }
  func.func @transform_3(%arg0: i32) -> (i32, i32) {
    %c0_i32 = arith.constant 0 : i32
    %c0_i32_0 = arith.constant 0 : i32
    %c0_i32_1 = arith.constant 0 : i32
    return %c0_i32, %c0_i32_0 : i32, i32
  }
  func.func @transform_4(%arg0: i32) -> (i32, i32) {
    %c0_i32 = arith.constant 0 : i32
    %c0_i32_0 = arith.constant 0 : i32
    %c0_i32_1 = arith.constant 0 : i32
    return %c0_i32, %c0_i32_0 : i32, i32
  }
  func.func @transform_5(%arg0: i32) -> (i32, i32) {
    %c0_i32 = arith.constant 0 : i32
    %c0_i32_0 = arith.constant 0 : i32
    %c0_i32_1 = arith.constant 0 : i32
    return %c0_i32, %c0_i32_0 : i32, i32
  }
  func.func @transform_6(%arg0: i32) -> (i32, i32) {
    %c0_i32 = arith.constant 0 : i32
    %c0_i32_0 = arith.constant 0 : i32
    %c0_i32_1 = arith.constant 0 : i32
    return %c0_i32, %c0_i32_0 : i32, i32
  }
  func.func @transform_7(%arg0: i32) -> (i32, i32) {
    %c0_i32 = arith.constant 0 : i32
    %c0_i32_0 = arith.constant 0 : i32
    return %c0_i32, %arg0 : i32, i32
  }
}

</mosaic_0001>

<llo_original>
// kernel: tpu_custom_call.1
$region0: #{tpu_custom_call.1}
  #allocation0 [shape = 'u32[]', space=smem, size = 0x4, offset = 0x4, fixed_abs, tag = 'smem constant byte address 0x4 - core index']
  #allocation1 [shape = 'u32[72,128]{1,0:T(1,128)}', space=vmem, size = 0x9000, scoped, tag = 'internal scratch']
  %s0 = inlined_call_operand.vmem [shape: f32[4,128], index: 0, kind: input, shape index: {}]
  %s1 = inlined_call_operand.vmem [shape: f32[32,4], index: 1, kind: input, shape index: {}]
  %s2 = inlined_call_operand.vmem [shape: f32[32,1], index: 2, kind: input, shape index: {}]
  %s3 = inlined_call_operand.vmem [shape: f32[32,32], index: 3, kind: input, shape index: {}]
  %s4 = inlined_call_operand.vmem [shape: f32[32,1], index: 4, kind: input, shape index: {}]
  %s5 = inlined_call_operand.vmem [shape: f32[12,32], index: 5, kind: input, shape index: {}]
  %s6 = inlined_call_operand.vmem [shape: f32[12,1], index: 6, kind: input, shape index: {}]
  %s7 = inlined_call_operand.hbm [shape: f32[12,128], index: 7, kind: output, shape index: {}]
  %s8 = sld [smem:[#allocation0]]
  $region38: #{tpu_custom_call.1} parent=0
    _
  %s10 = ssub.s32 1, %s8
  %s11 = scalar_select 0, %s10, %s8
  $region1: #{tpu_custom_call.1} parent=0
    #allocation2 [shape = 'u8[8192]{0}', space=vmem, size = 0x2000, scoped, tag = 'output window, operand 0, single buffered']
    #allocation3 [shape = 's32[1]{0}', space=sflag, size = 0x4, scoped, tag = 'scoped memory for tpu_custom_call.1']
    %12 = vsyncpa [#allocation3], 0
    // Predicated region
    $region2: #{tpu_custom_call.1} parent=1 // pred_check
      _
    $region3: #{tpu_custom_call.1} parent=1 // pred_check_branch
      %14 = sbr.rel (0) target = $region5
    $region4: #{tpu_custom_call.1} parent=1 // pred_region
      _
    $region5: #{tpu_custom_call.1} parent=1 // pred_fallthru
      _
    // Predicated region
    $region6: #{tpu_custom_call.1} parent=1 // pred_check
      _
    $region7: #{tpu_custom_call.1} parent=1 // pred_check_branch
      %16 = sbr.rel (0) target = $region9
    $region8: #{tpu_custom_call.1} parent=1 // pred_region
      _
    $region9: #{tpu_custom_call.1} parent=1 // pred_fallthru
      _
    // Predicated region
    $region10: #{tpu_custom_call.1} parent=1 // pred_check
      _
    $region11: #{tpu_custom_call.1} parent=1 // pred_check_branch
      %18 = sbr.rel (0) target = $region13
    $region12: #{tpu_custom_call.1} parent=1 // pred_region
      _
    $region13: #{tpu_custom_call.1} parent=1 // pred_fallthru
      _
    // Predicated region
    $region14: #{tpu_custom_call.1} parent=1 // pred_check
      _
    $region15: #{tpu_custom_call.1} parent=1 // pred_check_branch
      %20 = sbr.rel (0) target = $region17
    $region16: #{tpu_custom_call.1} parent=1 // pred_region
      _
    $region17: #{tpu_custom_call.1} parent=1 // pred_fallthru
      _
    // Predicated region
    $region18: #{tpu_custom_call.1} parent=1 // pred_check
      _
    $region19: #{tpu_custom_call.1} parent=1 // pred_check_branch
      %22 = sbr.rel (0) target = $region21
    $region20: #{tpu_custom_call.1} parent=1 // pred_region
      _
    $region21: #{tpu_custom_call.1} parent=1 // pred_fallthru
      _
    // Predicated region
    $region22: #{tpu_custom_call.1} parent=1 // pred_check
      _
    $region23: #{tpu_custom_call.1} parent=1 // pred_check_branch
      %24 = sbr.rel (0) target = $region25
    $region24: #{tpu_custom_call.1} parent=1 // pred_region
      _
    $region25: #{tpu_custom_call.1} parent=1 // pred_fallthru
      _
    // Predicated region
    $region26: #{tpu_custom_call.1} parent=1 // pred_check
      _
    $region27: #{tpu_custom_call.1} parent=1 // pred_check_branch
      %26 = sbr.rel (0) target = $region29
    $region28: #{tpu_custom_call.1} parent=1 // pred_region
      _
    $region29: #{tpu_custom_call.1} parent=1 // pred_fallthru
      _
    %v27 = vld [vmem:[%s0] sm:$0xf]
    %v28 = vld [vmem:[%s1] sm:$0xff]
    %v29 = vld [vmem:[%s1 + $0x8] sm:$0xff]
    %v30 = vld [vmem:[%s1 + $0x10] sm:$0xff]
    %v31 = vld [vmem:[%s1 + $0x18] sm:$0xff]
    %v32 = vld [vmem:[%s2] sm:$0xff]
    %v33 = vld [vmem:[%s2 + $0x8] sm:$0xff]
    %v34 = vld [vmem:[%s2 + $0x10] sm:$0xff]
    %v35 = vld [vmem:[%s2 + $0x18] sm:$0xff]
    %37 = vset.pattern.permute.xlu0 0
    %38 = vperm.xlu0 %37, %v32
    %v39 = vpop.permute.xlu0 %38
    %42 = vset.pattern.permute.xlu0 0
    %43 = vperm.xlu0 %42, %v33
    %v44 = vpop.permute.xlu0 %43
    %47 = vset.pattern.permute.xlu0 0
    %48 = vperm.xlu0 %47, %v34
    %v49 = vpop.permute.xlu0 %48
    %52 = vset.pattern.permute.xlu0 0
    %53 = vperm.xlu0 %52, %v35
    %v54 = vpop.permute.xlu0 %53
    %vm56 = vcmask 31744
    %v58 = vsel %vm56, %v28, 0
    %v61 = vsel %vm56, %v29, 0
    %v64 = vsel %vm56, %v30, 0
    %v67 = vsel %vm56, %v31, 0
    %vm69 = vcmask 1043456
    %v71 = vsel %vm69, %v27, 0
    %73 = vmatpush.msra.mxu0 0.0
    %74 = vmatpush.msra.mxu0 0.0
    %75 = vmatpush.msra.mxu0 0.0
    %76 = vmatpush.msra.mxu0 0.0
    %77 = vmatpush.msra.mxu0 0.0
    %78 = vmatpush.msra.mxu0 0.0
    %79 = vmatpush.msra.mxu0 0.0
    %80 = vmatpush.msra.mxu0 0.0
    %81 = vmatpush.msra.mxu0 0.0
    %82 = vmatpush.msra.mxu0 0.0
    %83 = vmatpush.msra.mxu0 0.0
    %84 = vmatpush.msra.mxu0 0.0
    %85 = vmatpush.msra.mxu0 0.0
    %86 = vmatpush.msra.mxu0 0.0
    %87 = vmatpush.msra.mxu0 0.0
    %88 = vmatpush.msra.mxu0 %v71
    %89 = vmatmul.f32.gmra.mxu0 %v58
    %v90 = vpop.f32.mrf.mxu0
    %v91 = vadd.f32 %v39, %v90
    %92 = vmatmul.f32.gmra.mxu0 %v61
    %v93 = vpop.f32.mrf.mxu0
    %v94 = vadd.f32 %v44, %v93
    %95 = vmatmul.f32.gmra.mxu0 %v64
    %v96 = vpop.f32.mrf.mxu0
    %v97 = vadd.f32 %v49, %v96
    %98 = vmatmul.f32.gmra.mxu0 %v67
    %v99 = vpop.f32.mrf.mxu0
    %v100 = vadd.f32 %v54, %v99
    %101 = vdwg.mxu0
    %v102 = vmax.f32 %v91, 0.0
    %v103 = vmax.f32 %v94, 0.0
    %v104 = vmax.f32 %v97, 0.0
    %v105 = vmax.f32 %v100, 0.0
    %v106 = vld [vmem:[%s3] sm:$0xff]
    %v107 = vld [vmem:[%s3 + $0x8] sm:$0xff]
    %v108 = vld [vmem:[%s3 + $0x10] sm:$0xff]
    %v109 = vld [vmem:[%s3 + $0x18] sm:$0xff]
    %v110 = vld [vmem:[%s4] sm:$0xff]
    %v111 = vld [vmem:[%s4 + $0x8] sm:$0xff]
    %v112 = vld [vmem:[%s4 + $0x10] sm:$0xff]
    %v113 = vld [vmem:[%s4 + $0x18] sm:$0xff]
    %115 = vset.pattern.permute.xlu0 0
    %116 = vperm.xlu0 %115, %v110
    %v117 = vpop.permute.xlu0 %116
    %120 = vset.pattern.permute.xlu0 0
    %121 = vperm.xlu0 %120, %v111
    %v122 = vpop.permute.xlu0 %121
    %125 = vset.pattern.permute.xlu0 0
    %126 = vperm.xlu0 %125, %v112
    %v127 = vpop.permute.xlu0 %126
    %130 = vset.pattern.permute.xlu0 0
    %131 = vperm.xlu0 %130, %v113
    %v132 = vpop.permute.xlu0 %131
    %vm134 = vcmask 261120
    %v136 = vsel %vm134, %v106, 0
    %v139 = vsel %vm134, %v107, 0
    %v142 = vsel %vm134, %v108, 0
    %v145 = vsel %vm134, %v109, 0
    %147 = vmatpush.msra.mxu0 0.0
    %148 = vmatpush.msra.mxu0 0.0
    %149 = vmatpush.msra.mxu0 0.0
    %150 = vmatpush.msra.mxu0 0.0
    %151 = vmatpush.msra.mxu0 0.0
    %152 = vmatpush.msra.mxu0 0.0
    %153 = vmatpush.msra.mxu0 0.0
    %154 = vmatpush.msra.mxu0 0.0
    %155 = vmatpush.msra.mxu0 0.0
    %156 = vmatpush.msra.mxu0 0.0
    %157 = vmatpush.msra.mxu0 0.0
    %158 = vmatpush.msra.mxu0 0.0
    %159 = vmatpush.msra.mxu0 %v105
    %160 = vmatpush.msra.mxu0 %v104
    %161 = vmatpush.msra.mxu0 %v103
    %162 = vmatpush.msra.mxu0 %v102
    %163 = vmatmul.f32.gmra.mxu0 %v136
    %v164 = vpop.f32.mrf.mxu0
    %v165 = vadd.f32 %v117, %v164
    %166 = vmatmul.f32.gmra.mxu0 %v139
    %v167 = vpop.f32.mrf.mxu0
    %v168 = vadd.f32 %v122, %v167
    %169 = vmatmul.f32.gmra.mxu0 %v142
    %v170 = vpop.f32.mrf.mxu0
    %v171 = vadd.f32 %v127, %v170
    %172 = vmatmul.f32.gmra.mxu0 %v145
    %v173 = vpop.f32.mrf.mxu0
    %v174 = vadd.f32 %v132, %v173
    %175 = vdwg.mxu0
    %v176 = vmax.f32 %v165, 0.0
    %v177 = vmax.f32 %v168, 0.0
    %v178 = vmax.f32 %v171, 0.0
    %v179 = vmax.f32 %v174, 0.0
    %v180 = vld [vmem:[%s5] sm:$0xff]
    %v181 = vld [vmem:[%s5 + $0x8] sm:$0xf]
    %v182 = vld [vmem:[%s6] sm:$0xff]
    %v183 = vld [vmem:[%s6 + $0x8] sm:$0xf]
    %185 = vset.pattern.permute.xlu0 0
    %186 = vperm.xlu0 %185, %v182
    %v187 = vpop.permute.xlu0 %186
    %190 = vset.pattern.permute.xlu0 0
    %191 = vperm.xlu0 %190, %v183
    %v192 = vpop.permute.xlu0 %191
    %v195 = vsel %vm134, %v180, 0
    %v198 = vsel %vm134, %v181, 0
    %200 = vmatpush.msra.mxu0 0.0
    %201 = vmatpush.msra.mxu0 0.0
    %202 = vmatpush.msra.mxu0 0.0
    %203 = vmatpush.msra.mxu0 0.0
    %204 = vmatpush.msra.mxu0 0.0
    %205 = vmatpush.msra.mxu0 0.0
    %206 = vmatpush.msra.mxu0 0.0
    %207 = vmatpush.msra.mxu0 0.0
    %208 = vmatpush.msra.mxu0 0.0
    %209 = vmatpush.msra.mxu0 0.0
    %210 = vmatpush.msra.mxu0 0.0
    %211 = vmatpush.msra.mxu0 0.0
    %212 = vmatpush.msra.mxu0 %v179
    %213 = vmatpush.msra.mxu0 %v178
    %214 = vmatpush.msra.mxu0 %v177
    %215 = vmatpush.msra.mxu0 %v176
    %216 = vmatmul.f32.gmra.mxu0 %v195
    %v217 = vpop.f32.mrf.mxu0
    %v218 = vadd.f32 %v187, %v217
    %219 = vmatmul.f32.gmra.mxu0 %v198
    %v220 = vpop.f32.mrf.mxu0
    %v221 = vadd.f32 %v192, %v220
    %222 = vdwg.mxu0
    %v223 = vand.u32 2147483647, %v218
    %vm224 = vcmp.le.f32.partialorder %v223, 0.7853982
    %vm225 = vcmp.lt.s32.totalorder %v218, 0
    %v226 = vand.u32 %v218, 2139095040
    %v227 = vshrl.u32 %v226, 23
    %v228 = vsub.s32 %v227, 127
    %v229 = vand.u32 2147483647, %v218
    %v230 = vand.u32 %v229, 8388607
    %v231 = vor.u32 %v230, 8388608
    %v232 = vsub.s32 0, %v231
    %v233 = vadd.s32 %v228, 1
    %vm234 = vcmp.gt.s32.totalorder %v233, 0
    %v235 = vsel %vm234, %v233, 0
    %v236 = vshrl.u32 %v235, 5
    %v237 = vand.u32 %v235, 31
    %v238 = vsub.s32 32, %v237
    %v239 = vshrl.u32 683565275, %v238
    %v240 = vshll.u32 683565275, %v237
    %v241 = vshrl.u32 2475754826, %v238
    %v242 = vor.u32 %v240, %v241
    %v243 = vshll.u32 2475754826, %v237
    %v244 = vshrl.u32 2131351028, %v238
    %v245 = vor.u32 %v243, %v244
    %v246 = vshll.u32 2131351028, %v237
    %v247 = vshrl.u32 2102212464, %v238
    %v248 = vor.u32 %v246, %v247
    %v249 = vshll.u32 2102212464, %v237
    %v250 = vshrl.u32 920167782, %v238
    %v251 = vor.u32 %v249, %v250
    %v252 = vshll.u32 920167782, %v237
    %v253 = vshrl.u32 1326507024, %v238
    %v254 = vor.u32 %v252, %v253
    %vm255 = vcmp.lt.s32.totalorder %v236, 1
    %vm256 = vcmp.lt.s32.totalorder %v236, 2
    %vm257 = vcmp.lt.s32.totalorder %v236, 3
    %vm258 = vcmp.lt.s32.totalorder %v236, 4
    %v259 = vsel %vm255, %v239, %v242
    %v260 = vsel %vm258, %v248, 2102212464
    %v261 = vsel %vm257, %v245, %v260
    %v262 = vsel %vm256, %v259, %v261
    %v263 = vsel %vm255, %v242, %v245
    %v264 = vsel %vm258, %v251, 920167782
    %v265 = vsel %vm257, %v248, %v264
    %v266 = vsel %vm256, %v263, %v265
    %v267 = vsel %vm255, %v245, %v248
    %v268 = vsel %vm258, %v254, 1326507024
    %v269 = vsel %vm257, %v251, %v268
    %v270 = vsel %vm256, %v267, %v269
    %v271 = vshll.u32 %v231, 8
    %v272 = vand.u32 %v271, 65535
    %v273 = vshrl.u32 %v271, 16
    %v274 = vand.u32 %v270, 65535
    %v275 = vshrl.u32 %v270, 16
    %v276 = vmul.u32 %v272, %v274
    %v277 = vmul.u32 %v272, %v275
    %v278 = vmul.u32 %v273, %v274
    %v279 = vmul.u32 %v273, %v275
    %v280 = vshll.u32 %v277, 16
    %v281 = vshrl.u32 %v277, 16
    %v282 = vshll.u32 %v278, 16
    %v283 = vshrl.u32 %v278, 16
    %vm284 = vc.u32 %v276, %v280
    %v285 = vsel %vm284, 1, 0
    %v286 = vadd.s32 %v276, %v280
    %v287 = vadd.s32 %v279, %v285
    %vm288 = vc.u32 %v286, %v282
    %v289 = vsel %vm288, 1, 0
    %v290 = vadd.s32 %v286, %v282
    %v291 = vadd.s32 %v287, %v289
    %v292 = vadd.s32 %v291, %v281
    %v293 = vadd.s32 %v292, %v283
    %v294 = vand.u32 %v271, 65535
    %v295 = vshrl.u32 %v271, 16
    %v296 = vand.u32 %v266, 65535
    %v297 = vshrl.u32 %v266, 16
    %v298 = vmul.u32 %v294, %v296
    %v299 = vmul.u32 %v294, %v297
    %v300 = vmul.u32 %v295, %v296
    %v301 = vmul.u32 %v295, %v297
    %v302 = vshll.u32 %v299, 16
    %v303 = vshrl.u32 %v299, 16
    %v304 = vshll.u32 %v300, 16
    %v305 = vshrl.u32 %v300, 16
    %vm306 = vc.u32 %v298, %v302
    %v307 = vsel %vm306, 1, 0
    %v308 = vadd.s32 %v298, %v302
    %v309 = vadd.s32 %v301, %v307
    %vm310 = vc.u32 %v308, %v304
    %v311 = vsel %vm310, 1, 0
    %v312 = vadd.s32 %v308, %v304
    %v313 = vadd.s32 %v309, %v311
    %v314 = vadd.s32 %v313, %v303
    %v315 = vadd.s32 %v314, %v305
    %v316 = vmul.u32 %v271, %v262
    %v317 = vadd.s32 %v293, %v312
    %vm318 = vc.u32 %v293, %v312
    %v319 = vadd.s32 %v315, 1
    %v320 = vsel %vm318, %v319, %v315
    %v321 = vadd.s32 %v316, %v320
    %v322 = vadd.s32 %v321, 536870912
    %v323 = vshrl.u32 %v322, 30
    %v324 = vshll.u32 %v323, 30
    %v325 = vsub.s32 %v321, %v324
    %vm326 = vcmp.lt.s32.totalorder %v325, 0
    %v327 = vsub.s32 0, %v325
    %v328 = vsel %vm326, %v327, %v325
    %v329 = vclz %v328
    %v330 = vsub.s32 %v329, 2
    %vm331 = vcmp.gt.s32.totalorder 0, %v330
    %v332 = vsel %vm331, 0, %v330
    %v333 = vsub.s32 32, %v332
    %v334 = vshll.u32 %v325, %v332
    %v335 = vshrl.u32 %v317, %v333
    %v336 = vor.u32 %v334, %v335
    %v337 = vsub.s32 4294967266, %v332
    %v338 = vadd.s32 %v337, 127
    %v339 = vshll.u32 %v338, 23
    %v340 = vor.u32 4788187, %v339
    %v341 = vand.u32 2147483647, %v340
    %v343 = vcvt.s32.f32 %v336
    %v344 = vmul.f32 %v343, %v341
    %v345 = vxor.u32 %v344, 2147483648
    %v346 = vsel %vm225, %v345, %v344
    %v347 = vsub.s32 4, %v323
    %v348 = vsel %vm225, %v347, %v323
    %v349 = vsel %vm224, %v218, %v346
    %v350 = vsel %vm224, 0, %v348
    %v351 = vmul.f32 %v349, %v349
    %v352 = vmul.f32 %v351, -0.001358992
    %v353 = vadd.f32 %v352, 0.041655596
    %v354 = vmul.f32 %v351, %v353
    %v355 = vadd.f32 %v354, -0.4999988
    %v356 = vmul.f32 %v351, %v355
    %v357 = vadd.f32 1.0, %v356
    %v358 = vmul.f32 %v349, %v349
    %v359 = vmul.f32 %v358, -0.00019511016
    %v360 = vadd.f32 %v359, 0.008332121
    %v361 = vmul.f32 %v358, %v360
    %v362 = vadd.f32 %v361, -0.16666654
    %v363 = vmul.f32 %v358, %v362
    %v364 = vadd.f32 %v363, 1.0
    %v365 = vmul.f32 %v364, %v349
    %vm366 = vweird.f32 %v218
    %v367 = vand.u32 %v350, 3
    %vm368 = vcmp.lt.s32.totalorder %v367, 2
    %vm369 = vcmp.eq.s32.totalorder %v367, 0
    %v370 = vxor.u32 %v365, 2147483648
    %v371 = vsel %vm369, %v357, %v370
    %vm372 = vcmp.eq.s32.totalorder %v367, 2
    %v373 = vxor.u32 %v357, 2147483648
    %v374 = vsel %vm372, %v373, %v365
    %v375 = vsel %vm368, %v371, %v374
    %v376 = vsel %vm366, nan, %v375
    %v377 = vand.u32 2147483647, %v221
    %vm378 = vcmp.le.f32.partialorder %v377, 0.7853982
    %vm379 = vcmp.lt.s32.totalorder %v221, 0
    %v380 = vand.u32 %v221, 2139095040
    %v381 = vshrl.u32 %v380, 23
    %v382 = vsub.s32 %v381, 127
    %v383 = vand.u32 2147483647, %v221
    %v384 = vand.u32 %v383, 8388607
    %v385 = vor.u32 %v384, 8388608
    %v386 = vsub.s32 0, %v385
    %v387 = vadd.s32 %v382, 1
    %vm388 = vcmp.gt.s32.totalorder %v387, 0
    %v389 = vsel %vm388, %v387, 0
    %v390 = vshrl.u32 %v389, 5
    %v391 = vand.u32 %v389, 31
    %v392 = vsub.s32 32, %v391
    %v393 = vshrl.u32 683565275, %v392
    %v394 = vshll.u32 683565275, %v391
    %v395 = vshrl.u32 2475754826, %v392
    %v396 = vor.u32 %v394, %v395
    %v397 = vshll.u32 2475754826, %v391
    %v398 = vshrl.u32 2131351028, %v392
    %v399 = vor.u32 %v397, %v398
    %v400 = vshll.u32 2131351028, %v391
    %v401 = vshrl.u32 2102212464, %v392
    %v402 = vor.u32 %v400, %v401
    %v403 = vshll.u32 2102212464, %v391
    %v404 = vshrl.u32 920167782, %v392
    %v405 = vor.u32 %v403, %v404
    %v406 = vshll.u32 920167782, %v391
    %v407 = vshrl.u32 1326507024, %v392
    %v408 = vor.u32 %v406, %v407
    %vm409 = vcmp.lt.s32.totalorder %v390, 1
    %vm410 = vcmp.lt.s32.totalorder %v390, 2
    %vm411 = vcmp.lt.s32.totalorder %v390, 3
    %vm412 = vcmp.lt.s32.totalorder %v390, 4
    %v413 = vsel %vm409, %v393, %v396
    %v414 = vsel %vm412, %v402, 2102212464
    %v415 = vsel %vm411, %v399, %v414
    %v416 = vsel %vm410, %v413, %v415
    %v417 = vsel %vm409, %v396, %v399
    %v418 = vsel %vm412, %v405, 920167782
    %v419 = vsel %vm411, %v402, %v418
    %v420 = vsel %vm410, %v417, %v419
    %v421 = vsel %vm409, %v399, %v402
    %v422 = vsel %vm412, %v408, 1326507024
    %v423 = vsel %vm411, %v405, %v422
    %v424 = vsel %vm410, %v421, %v423
    %v425 = vshll.u32 %v385, 8
    %v426 = vand.u32 %v425, 65535
    %v427 = vshrl.u32 %v425, 16
    %v428 = vand.u32 %v424, 65535
    %v429 = vshrl.u32 %v424, 16
    %v430 = vmul.u32 %v426, %v428
    %v431 = vmul.u32 %v426, %v429
    %v432 = vmul.u32 %v427, %v428
    %v433 = vmul.u32 %v427, %v429
    %v434 = vshll.u32 %v431, 16
    %v435 = vshrl.u32 %v431, 16
    %v436 = vshll.u32 %v432, 16
    %v437 = vshrl.u32 %v432, 16
    %vm438 = vc.u32 %v430, %v434
    %v439 = vsel %vm438, 1, 0
    %v440 = vadd.s32 %v430, %v434
    %v441 = vadd.s32 %v433, %v439
    %vm442 = vc.u32 %v440, %v436
    %v443 = vsel %vm442, 1, 0
    %v444 = vadd.s32 %v440, %v436
    %v445 = vadd.s32 %v441, %v443
    %v446 = vadd.s32 %v445, %v435
    %v447 = vadd.s32 %v446, %v437
    %v448 = vand.u32 %v425, 65535
    %v449 = vshrl.u32 %v425, 16
    %v450 = vand.u32 %v420, 65535
    %v451 = vshrl.u32 %v420, 16
    %v452 = vmul.u32 %v448, %v450
    %v453 = vmul.u32 %v448, %v451
    %v454 = vmul.u32 %v449, %v450
    %v455 = vmul.u32 %v449, %v451
    %v456 = vshll.u32 %v453, 16
    %v457 = vshrl.u32 %v453, 16
    %v458 = vshll.u32 %v454, 16
    %v459 = vshrl.u32 %v454, 16
    %vm460 = vc.u32 %v452, %v456
    %v461 = vsel %vm460, 1, 0
    %v462 = vadd.s32 %v452, %v456
    %v463 = vadd.s32 %v455, %v461
    %vm464 = vc.u32 %v462, %v458
    %v465 = vsel %vm464, 1, 0
    %v466 = vadd.s32 %v462, %v458
    %v467 = vadd.s32 %v463, %v465
    %v468 = vadd.s32 %v467, %v457
    %v469 = vadd.s32 %v468, %v459
    %v470 = vmul.u32 %v425, %v416
    %v471 = vadd.s32 %v447, %v466
    %vm472 = vc.u32 %v447, %v466
    %v473 = vadd.s32 %v469, 1
    %v474 = vsel %vm472, %v473, %v469
    %v475 = vadd.s32 %v470, %v474
    %v476 = vadd.s32 %v475, 536870912
    %v477 = vshrl.u32 %v476, 30
    %v478 = vshll.u32 %v477, 30
    %v479 = vsub.s32 %v475, %v478
    %vm480 = vcmp.lt.s32.totalorder %v479, 0
    %v481 = vsub.s32 0, %v479
    %v482 = vsel %vm480, %v481, %v479
    %v483 = vclz %v482
    %v484 = vsub.s32 %v483, 2
    %vm485 = vcmp.gt.s32.totalorder 0, %v484
    %v486 = vsel %vm485, 0, %v484
    %v487 = vsub.s32 32, %v486
    %v488 = vshll.u32 %v479, %v486
    %v489 = vshrl.u32 %v471, %v487
    %v490 = vor.u32 %v488, %v489
    %v491 = vsub.s32 4294967266, %v486
    %v492 = vadd.s32 %v491, 127
    %v493 = vshll.u32 %v492, 23
    %v494 = vor.u32 4788187, %v493
    %v495 = vand.u32 2147483647, %v494
    %v497 = vcvt.s32.f32 %v490
    %v498 = vmul.f32 %v497, %v495
    %v499 = vxor.u32 %v498, 2147483648
    %v500 = vsel %vm379, %v499, %v498
    %v501 = vsub.s32 4, %v477
    %v502 = vsel %vm379, %v501, %v477
    %v503 = vsel %vm378, %v221, %v500
    %v504 = vsel %vm378, 0, %v502
    %v505 = vmul.f32 %v503, %v503
    %v506 = vmul.f32 %v505, -0.001358992
    %v507 = vadd.f32 %v506, 0.041655596
    %v508 = vmul.f32 %v505, %v507
    %v509 = vadd.f32 %v508, -0.4999988
    %v510 = vmul.f32 %v505, %v509
    %v511 = vadd.f32 1.0, %v510
    %v512 = vmul.f32 %v503, %v503
    %v513 = vmul.f32 %v512, -0.00019511016
    %v514 = vadd.f32 %v513, 0.008332121
    %v515 = vmul.f32 %v512, %v514
    %v516 = vadd.f32 %v515, -0.16666654
    %v517 = vmul.f32 %v512, %v516
    %v518 = vadd.f32 %v517, 1.0
    %v519 = vmul.f32 %v518, %v503
    %vm520 = vweird.f32 %v221
    %v521 = vand.u32 %v504, 3
    %vm522 = vcmp.lt.s32.totalorder %v521, 2
    %vm523 = vcmp.eq.s32.totalorder %v521, 0
    %v524 = vxor.u32 %v519, 2147483648
    %v525 = vsel %vm523, %v511, %v524
    %vm526 = vcmp.eq.s32.totalorder %v521, 2
    %v527 = vxor.u32 %v511, 2147483648
    %v528 = vsel %vm526, %v527, %v519
    %v529 = vsel %vm522, %v525, %v528
    %v530 = vsel %vm520, nan, %v529
    %v531 = vand.u32 2147483647, %v218
    %vm532 = vcmp.le.f32.partialorder %v531, 0.7853982
    %vm533 = vcmp.lt.s32.totalorder %v218, 0
    %v534 = vand.u32 %v218, 2139095040
    %v535 = vshrl.u32 %v534, 23
    %v536 = vsub.s32 %v535, 127
    %v537 = vand.u32 2147483647, %v218
    %v538 = vand.u32 %v537, 8388607
    %v539 = vor.u32 %v538, 8388608
    %v540 = vsub.s32 0, %v539
    %v541 = vadd.s32 %v536, 1
    %vm542 = vcmp.gt.s32.totalorder %v541, 0
    %v543 = vsel %vm542, %v541, 0
    %v544 = vshrl.u32 %v543, 5
    %v545 = vand.u32 %v543, 31
    %v546 = vsub.s32 32, %v545
    %v547 = vshrl.u32 683565275, %v546
    %v548 = vshll.u32 683565275, %v545
    %v549 = vshrl.u32 2475754826, %v546
    %v550 = vor.u32 %v548, %v549
    %v551 = vshll.u32 2475754826, %v545
    %v552 = vshrl.u32 2131351028, %v546
    %v553 = vor.u32 %v551, %v552
    %v554 = vshll.u32 2131351028, %v545
    %v555 = vshrl.u32 2102212464, %v546
    %v556 = vor.u32 %v554, %v555
    %v557 = vshll.u32 2102212464, %v545
    %v558 = vshrl.u32 920167782, %v546
    %v559 = vor.u32 %v557, %v558
    %v560 = vshll.u32 920167782, %v545
    %v561 = vshrl.u32 1326507024, %v546
    %v562 = vor.u32 %v560, %v561
    %vm563 = vcmp.lt.s32.totalorder %v544, 1
    %vm564 = vcmp.lt.s32.totalorder %v544, 2
    %vm565 = vcmp.lt.s32.totalorder %v544, 3
    %vm566 = vcmp.lt.s32.totalorder %v544, 4
    %v567 = vsel %vm563, %v547, %v550
    %v568 = vsel %vm566, %v556, 2102212464
    %v569 = vsel %vm565, %v553, %v568
    %v570 = vsel %vm564, %v567, %v569
    %v571 = vsel %vm563, %v550, %v553
    %v572 = vsel %vm566, %v559, 920167782
    %v573 = vsel %vm565, %v556, %v572
    %v574 = vsel %vm564, %v571, %v573
    %v575 = vsel %vm563, %v553, %v556
    %v576 = vsel %vm566, %v562, 1326507024
    %v577 = vsel %vm565, %v559, %v576
    %v578 = vsel %vm564, %v575, %v577
    %v579 = vshll.u32 %v539, 8
    %v580 = vand.u32 %v579, 65535
    %v581 = vshrl.u32 %v579, 16
    %v582 = vand.u32 %v578, 65535
    %v583 = vshrl.u32 %v578, 16
    %v584 = vmul.u32 %v580, %v582
    %v585 = vmul.u32 %v580, %v583
    %v586 = vmul.u32 %v581, %v582
    %v587 = vmul.u32 %v581, %v583
    %v588 = vshll.u32 %v585, 16
    %v589 = vshrl.u32 %v585, 16
    %v590 = vshll.u32 %v586, 16
    %v591 = vshrl.u32 %v586, 16
    %vm592 = vc.u32 %v584, %v588
    %v593 = vsel %vm592, 1, 0
    %v594 = vadd.s32 %v584, %v588
    %v595 = vadd.s32 %v587, %v593
    %vm596 = vc.u32 %v594, %v590
    %v597 = vsel %vm596, 1, 0
    %v598 = vadd.s32 %v594, %v590
    %v599 = vadd.s32 %v595, %v597
    %v600 = vadd.s32 %v599, %v589
    %v601 = vadd.s32 %v600, %v591
    %v602 = vand.u32 %v579, 65535
    %v603 = vshrl.u32 %v579, 16
    %v604 = vand.u32 %v574, 65535
    %v605 = vshrl.u32 %v574, 16
    %v606 = vmul.u32 %v602, %v604
    %v607 = vmul.u32 %v602, %v605
    %v608 = vmul.u32 %v603, %v604
    %v609 = vmul.u32 %v603, %v605
    %v610 = vshll.u32 %v607, 16
    %v611 = vshrl.u32 %v607, 16
    %v612 = vshll.u32 %v608, 16
    %v613 = vshrl.u32 %v608, 16
    %vm614 = vc.u32 %v606, %v610
    %v615 = vsel %vm614, 1, 0
    %v616 = vadd.s32 %v606, %v610
    %v617 = vadd.s32 %v609, %v615
    %vm618 = vc.u32 %v616, %v612
    %v619 = vsel %vm618, 1, 0
    %v620 = vadd.s32 %v616, %v612
    %v621 = vadd.s32 %v617, %v619
    %v622 = vadd.s32 %v621, %v611
    %v623 = vadd.s32 %v622, %v613
    %v624 = vmul.u32 %v579, %v570
    %v625 = vadd.s32 %v601, %v620
    %vm626 = vc.u32 %v601, %v620
    %v627 = vadd.s32 %v623, 1
    %v628 = vsel %vm626, %v627, %v623
    %v629 = vadd.s32 %v624, %v628
    %v630 = vadd.s32 %v629, 536870912
    %v631 = vshrl.u32 %v630, 30
    %v632 = vshll.u32 %v631, 30
    %v633 = vsub.s32 %v629, %v632
    %vm634 = vcmp.lt.s32.totalorder %v633, 0
    %v635 = vsub.s32 0, %v633
    %v636 = vsel %vm634, %v635, %v633
    %v637 = vclz %v636
    %v638 = vsub.s32 %v637, 2
    %vm639 = vcmp.gt.s32.totalorder 0, %v638
    %v640 = vsel %vm639, 0, %v638
    %v641 = vsub.s32 32, %v640
    %v642 = vshll.u32 %v633, %v640
    %v643 = vshrl.u32 %v625, %v641
    %v644 = vor.u32 %v642, %v643
    %v645 = vsub.s32 4294967266, %v640
    %v646 = vadd.s32 %v645, 127
    %v647 = vshll.u32 %v646, 23
    %v648 = vor.u32 4788187, %v647
    %v649 = vand.u32 2147483647, %v648
    %v651 = vcvt.s32.f32 %v644
    %v652 = vmul.f32 %v651, %v649
    %v653 = vxor.u32 %v652, 2147483648
    %v654 = vsel %vm533, %v653, %v652
    %v655 = vsub.s32 4, %v631
    %v656 = vsel %vm533, %v655, %v631
    %v657 = vsel %vm532, %v218, %v654
    %v658 = vsel %vm532, 0, %v656
    %v659 = vmul.f32 %v657, %v657
    %v660 = vmul.f32 %v659, -0.001358992
    %v661 = vadd.f32 %v660, 0.041655596
    %v662 = vmul.f32 %v659, %v661
    %v663 = vadd.f32 %v662, -0.4999988
    %v664 = vmul.f32 %v659, %v663
    %v665 = vadd.f32 1.0, %v664
    %v666 = vmul.f32 %v657, %v657
    %v667 = vmul.f32 %v666, -0.00019511016
    %v668 = vadd.f32 %v667, 0.008332121
    %v669 = vmul.f32 %v666, %v668
    %v670 = vadd.f32 %v669, -0.16666654
    %v671 = vmul.f32 %v666, %v670
    %v672 = vadd.f32 %v671, 1.0
    %v673 = vmul.f32 %v672, %v657
    %vm674 = vweird.f32 %v218
    %v675 = vadd.s32 %v658, 3
    %v676 = vand.u32 %v675, 3
    %vm677 = vcmp.lt.s32.totalorder %v676, 2
    %vm678 = vcmp.eq.s32.totalorder %v676, 0
    %v679 = vxor.u32 %v673, 2147483648
    %v680 = vsel %vm678, %v665, %v679
    %vm681 = vcmp.eq.s32.totalorder %v676, 2
    %v682 = vxor.u32 %v665, 2147483648
    %v683 = vsel %vm681, %v682, %v673
    %v684 = vsel %vm677, %v680, %v683
    %v685 = vsel %vm674, nan, %v684
    %v686 = vand.u32 2147483647, %v221
    %vm687 = vcmp.le.f32.partialorder %v686, 0.7853982
    %vm688 = vcmp.lt.s32.totalorder %v221, 0
    %v689 = vand.u32 %v221, 2139095040
    %v690 = vshrl.u32 %v689, 23
    %v691 = vsub.s32 %v690, 127
    %v692 = vand.u32 2147483647, %v221
    %v693 = vand.u32 %v692, 8388607
    %v694 = vor.u32 %v693, 8388608
    %v695 = vsub.s32 0, %v694
    %v696 = vadd.s32 %v691, 1
    %vm697 = vcmp.gt.s32.totalorder %v696, 0
    %v698 = vsel %vm697, %v696, 0
    %v699 = vshrl.u32 %v698, 5
    %v700 = vand.u32 %v698, 31
    %v701 = vsub.s32 32, %v700
    %v702 = vshrl.u32 683565275, %v701
    %v703 = vshll.u32 683565275, %v700
    %v704 = vshrl.u32 2475754826, %v701
    %v705 = vor.u32 %v703, %v704
    %v706 = vshll.u32 2475754826, %v700
    %v707 = vshrl.u32 2131351028, %v701
    %v708 = vor.u32 %v706, %v707
    %v709 = vshll.u32 2131351028, %v700
    %v710 = vshrl.u32 2102212464, %v701
    %v711 = vor.u32 %v709, %v710
    %v712 = vshll.u32 2102212464, %v700
    %v713 = vshrl.u32 920167782, %v701
    %v714 = vor.u32 %v712, %v713
    %v715 = vshll.u32 920167782, %v700
    %v716 = vshrl.u32 1326507024, %v701
    %v717 = vor.u32 %v715, %v716
    %vm718 = vcmp.lt.s32.totalorder %v699, 1
    %vm719 = vcmp.lt.s32.totalorder %v699, 2
    %vm720 = vcmp.lt.s32.totalorder %v699, 3
    %vm721 = vcmp.lt.s32.totalorder %v699, 4
    %v722 = vsel %vm718, %v702, %v705
    %v723 = vsel %vm721, %v711, 2102212464
    %v724 = vsel %vm720, %v708, %v723
    %v725 = vsel %vm719, %v722, %v724
    %v726 = vsel %vm718, %v705, %v708
    %v727 = vsel %vm721, %v714, 920167782
    %v728 = vsel %vm720, %v711, %v727
    %v729 = vsel %vm719, %v726, %v728
    %v730 = vsel %vm718, %v708, %v711
    %v731 = vsel %vm721, %v717, 1326507024
    %v732 = vsel %vm720, %v714, %v731
    %v733 = vsel %vm719, %v730, %v732
    %v734 = vshll.u32 %v694, 8
    %v735 = vand.u32 %v734, 65535
    %v736 = vshrl.u32 %v734, 16
    %v737 = vand.u32 %v733, 65535
    %v738 = vshrl.u32 %v733, 16
    %v739 = vmul.u32 %v735, %v737
    %v740 = vmul.u32 %v735, %v738
    %v741 = vmul.u32 %v736, %v737
    %v742 = vmul.u32 %v736, %v738
    %v743 = vshll.u32 %v740, 16
    %v744 = vshrl.u32 %v740, 16
    %v745 = vshll.u32 %v741, 16
    %v746 = vshrl.u32 %v741, 16
    %vm747 = vc.u32 %v739, %v743
    %v748 = vsel %vm747, 1, 0
    %v749 = vadd.s32 %v739, %v743
    %v750 = vadd.s32 %v742, %v748
    %vm751 = vc.u32 %v749, %v745
    %v752 = vsel %vm751, 1, 0
    %v753 = vadd.s32 %v749, %v745
    %v754 = vadd.s32 %v750, %v752
    %v755 = vadd.s32 %v754, %v744
    %v756 = vadd.s32 %v755, %v746
    %v757 = vand.u32 %v734, 65535
    %v758 = vshrl.u32 %v734, 16
    %v759 = vand.u32 %v729, 65535
    %v760 = vshrl.u32 %v729, 16
    %v761 = vmul.u32 %v757, %v759
    %v762 = vmul.u32 %v757, %v760
    %v763 = vmul.u32 %v758, %v759
    %v764 = vmul.u32 %v758, %v760
    %v765 = vshll.u32 %v762, 16
    %v766 = vshrl.u32 %v762, 16
    %v767 = vshll.u32 %v763, 16
    %v768 = vshrl.u32 %v763, 16
    %vm769 = vc.u32 %v761, %v765
    %v770 = vsel %vm769, 1, 0
    %v771 = vadd.s32 %v761, %v765
    %v772 = vadd.s32 %v764, %v770
    %vm773 = vc.u32 %v771, %v767
    %v774 = vsel %vm773, 1, 0
    %v775 = vadd.s32 %v771, %v767
    %v776 = vadd.s32 %v772, %v774
    %v777 = vadd.s32 %v776, %v766
    %v778 = vadd.s32 %v777, %v768
    %v779 = vmul.u32 %v734, %v725
    %v780 = vadd.s32 %v756, %v775
    %vm781 = vc.u32 %v756, %v775
    %v782 = vadd.s32 %v778, 1
    %v783 = vsel %vm781, %v782, %v778
    %v784 = vadd.s32 %v779, %v783
    %v785 = vadd.s32 %v784, 536870912
    %v786 = vshrl.u32 %v785, 30
    %v787 = vshll.u32 %v786, 30
    %v788 = vsub.s32 %v784, %v787
    %vm789 = vcmp.lt.s32.totalorder %v788, 0
    %v790 = vsub.s32 0, %v788
    %v791 = vsel %vm789, %v790, %v788
    %v792 = vclz %v791
    %v793 = vsub.s32 %v792, 2
    %vm794 = vcmp.gt.s32.totalorder 0, %v793
    %v795 = vsel %vm794, 0, %v793
    %v796 = vsub.s32 32, %v795
    %v797 = vshll.u32 %v788, %v795
    %v798 = vshrl.u32 %v780, %v796
    %v799 = vor.u32 %v797, %v798
    %v800 = vsub.s32 4294967266, %v795
    %v801 = vadd.s32 %v800, 127
    %v802 = vshll.u32 %v801, 23
    %v803 = vor.u32 4788187, %v802
    %v804 = vand.u32 2147483647, %v803
    %v806 = vcvt.s32.f32 %v799
    %v807 = vmul.f32 %v806, %v804
    %v808 = vxor.u32 %v807, 2147483648
    %v809 = vsel %vm688, %v808, %v807
    %v810 = vsub.s32 4, %v786
    %v811 = vsel %vm688, %v810, %v786
    %v812 = vsel %vm687, %v221, %v809
    %v813 = vsel %vm687, 0, %v811
    %v814 = vmul.f32 %v812, %v812
    %v815 = vmul.f32 %v814, -0.001358992
    %v816 = vadd.f32 %v815, 0.041655596
    %v817 = vmul.f32 %v814, %v816
    %v818 = vadd.f32 %v817, -0.4999988
    %v819 = vmul.f32 %v814, %v818
    %v820 = vadd.f32 1.0, %v819
    %v821 = vmul.f32 %v812, %v812
    %v822 = vmul.f32 %v821, -0.00019511016
    %v823 = vadd.f32 %v822, 0.008332121
    %v824 = vmul.f32 %v821, %v823
    %v825 = vadd.f32 %v824, -0.16666654
    %v826 = vmul.f32 %v821, %v825
    %v827 = vadd.f32 %v826, 1.0
    %v828 = vmul.f32 %v827, %v812
    %vm829 = vweird.f32 %v221
    %v830 = vadd.s32 %v813, 3
    %v831 = vand.u32 %v830, 3
    %vm832 = vcmp.lt.s32.totalorder %v831, 2
    %vm833 = vcmp.eq.s32.totalorder %v831, 0
    %v834 = vxor.u32 %v828, 2147483648
    %v835 = vsel %vm833, %v820, %v834
    %vm836 = vcmp.eq.s32.totalorder %v831, 2
    %v837 = vxor.u32 %v820, 2147483648
    %v838 = vsel %vm836, %v837, %v828
    %v839 = vsel %vm832, %v835, %v838
    %v840 = vsel %vm829, nan, %v839
    %v841 = vsub.f32 1.0, %v376
    %v843 = vrot.slane %v841, 7
    %v845 = vmul.f32 %v218, %v843
    %v847 = vrot.slane %v685, 7
    %v849 = vmul.f32 %v218, %v847
    %v850 = vsub.f32 0.0, %v685
    %v852 = vrot.slane %v376, 1
    %v854 = vmul.f32 %v850, %v852
    %v855 = vrot.slane %v685, 1
    %v857 = vmul.f32 %v850, %v855
    %v859 = vrot.slane %v845, 2
    %v861 = vmul.f32 %v850, %v859
    %v862 = vmul.f32 %v376, %v852
    %v863 = vmul.f32 %v376, %v855
    %v864 = vmul.f32 %v376, %v859
    %v865 = vrot.slane %v376, 3
    %v867 = vmul.f32 %v376, %v865
    %v868 = vrot.slane %v685, 3
    %v870 = vmul.f32 %v854, %v868
    %v871 = vadd.f32 %v867, %v870
    %v873 = vrot.slane %v854, 3
    %v875 = vmul.f32 %v376, %v873
    %v877 = vrot.slane %v862, 3
    %v879 = vmul.f32 %v854, %v877
    %v880 = vadd.f32 %v875, %v879
    %v881 = vrot.slane %v685, 4
    %v883 = vmul.f32 %v857, %v881
    %v884 = vsub.f32 %v880, %v883
    %v886 = vrot.slane %v857, 3
    %v888 = vmul.f32 %v376, %v886
    %v890 = vrot.slane %v863, 3
    %v892 = vmul.f32 %v854, %v890
    %v893 = vadd.f32 %v888, %v892
    %v894 = vrot.slane %v376, 4
    %v896 = vmul.f32 %v857, %v894
    %v897 = vadd.f32 %v893, %v896
    %v899 = vrot.slane %v861, 3
    %v901 = vmul.f32 %v376, %v899
    %v903 = vrot.slane %v864, 3
    %v905 = vmul.f32 %v854, %v903
    %v906 = vadd.f32 %v901, %v905
    %v908 = vrot.slane %v849, 5
    %v910 = vmul.f32 %v857, %v908
    %v911 = vadd.f32 %v906, %v910
    %v912 = vadd.f32 %v911, %v861
    %v913 = vmul.f32 %v685, %v865
    %v914 = vmul.f32 %v862, %v868
    %v915 = vadd.f32 %v913, %v914
    %v916 = vmul.f32 %v685, %v873
    %v917 = vmul.f32 %v862, %v877
    %v918 = vadd.f32 %v916, %v917
    %v919 = vmul.f32 %v863, %v881
    %v920 = vsub.f32 %v918, %v919
    %v921 = vmul.f32 %v685, %v886
    %v922 = vmul.f32 %v862, %v890
    %v923 = vadd.f32 %v921, %v922
    %v924 = vmul.f32 %v863, %v894
    %v925 = vadd.f32 %v923, %v924
    %v926 = vmul.f32 %v685, %v899
    %v927 = vmul.f32 %v862, %v903
    %v928 = vadd.f32 %v926, %v927
    %v929 = vmul.f32 %v863, %v908
    %v930 = vadd.f32 %v928, %v929
    %v931 = vadd.f32 %v930, %v864
    %v932 = vmul.f32 %v376, 0.0
    %v933 = vrot.slane %v685, 2
    %v935 = vmul.f32 %v850, %v933
    %v937 = vrot.slane %v935, 6
    %v939 = vadd.f32 %v932, %v937
    %v940 = vmul.f32 %v854, 0.0
    %v941 = vrot.slane %v862, 2
    %v943 = vmul.f32 %v850, %v941
    %v945 = vrot.slane %v943, 6
    %v947 = vadd.f32 %v940, %v945
    %v948 = vmul.f32 %v376, %v868
    %v950 = vrot.slane %v948, 6
    %v952 = vsub.f32 %v947, %v950
    %v953 = vmul.f32 %v857, 0.0
    %v954 = vrot.slane %v863, 2
    %v956 = vmul.f32 %v850, %v954
    %v958 = vrot.slane %v956, 6
    %v960 = vadd.f32 %v953, %v958
    %v962 = vrot.slane %v867, 6
    %v964 = vadd.f32 %v960, %v962
    %v965 = vmul.f32 %v861, 0.0
    %v966 = vrot.slane %v864, 2
    %v968 = vmul.f32 %v850, %v966
    %v970 = vrot.slane %v968, 6
    %v972 = vadd.f32 %v965, %v970
    %v973 = vrot.slane %v849, 4
    %v975 = vmul.f32 %v376, %v973
    %v977 = vrot.slane %v975, 6
    %v979 = vadd.f32 %v972, %v977
    %v980 = vrot.slane %v849, 7
    %v982 = vadd.f32 %v979, %v980
    %v983 = vmul.f32 %v221, %v843
    %v984 = vmul.f32 %v221, %v847
    %v986 = vrot.slane %v983, 2
    %v988 = vmul.f32 %v850, %v986
    %v989 = vmul.f32 %v376, %v986
    %v990 = vrot.slane %v376, 6
    %v992 = vmul.f32 %v871, %v990
    %v993 = vrot.slane %v685, 6
    %v995 = vmul.f32 %v884, %v993
    %v996 = vadd.f32 %v992, %v995
    %v997 = vrot.slane %v854, 6
    %v999 = vmul.f32 %v871, %v997
    %v1000 = vrot.slane %v862, 6
    %v1002 = vmul.f32 %v884, %v1000
    %v1003 = vadd.f32 %v999, %v1002
    %v1004 = vmul.f32 %v897, %v847
    %v1005 = vsub.f32 %v1003, %v1004
    %v1006 = vrot.slane %v857, 6
    %v1008 = vmul.f32 %v871, %v1006
    %v1009 = vrot.slane %v863, 6
    %v1011 = vmul.f32 %v884, %v1009
    %v1012 = vadd.f32 %v1008, %v1011
    %v1013 = vrot.slane %v376, 7
    %v1015 = vmul.f32 %v897, %v1013
    %v1016 = vadd.f32 %v1012, %v1015
    %v1018 = vrot.slane %v988, 6
    %v1020 = vmul.f32 %v871, %v1018
    %v1022 = vrot.slane %v989, 6
    %v1024 = vmul.f32 %v884, %v1022
    %v1025 = vadd.f32 %v1020, %v1024
    %v1026 = vmul.f32 %v897, %v984
    %v1027 = vadd.f32 %v1025, %v1026
    %v1028 = vadd.f32 %v1027, %v912
    %v1029 = vmul.f32 %v915, %v990
    %v1030 = vmul.f32 %v920, %v993
    %v1031 = vadd.f32 %v1029, %v1030
    %v1032 = vmul.f32 %v915, %v997
    %v1033 = vmul.f32 %v920, %v1000
    %v1034 = vadd.f32 %v1032, %v1033
    %v1035 = vmul.f32 %v925, %v847
    %v1036 = vsub.f32 %v1034, %v1035
    %v1037 = vmul.f32 %v915, %v1006
    %v1038 = vmul.f32 %v920, %v1009
    %v1039 = vadd.f32 %v1037, %v1038
    %v1040 = vmul.f32 %v925, %v1013
    %v1041 = vadd.f32 %v1039, %v1040
    %v1042 = vmul.f32 %v915, %v1018
    %v1043 = vmul.f32 %v920, %v1022
    %v1044 = vadd.f32 %v1042, %v1043
    %v1045 = vmul.f32 %v925, %v984
    %v1046 = vadd.f32 %v1044, %v1045
    %v1047 = vadd.f32 %v1046, %v931
    %v1048 = vmul.f32 %v939, %v865
    %v1049 = vmul.f32 %v952, %v868
    %v1050 = vadd.f32 %v1048, %v1049
    %v1051 = vmul.f32 %v939, %v873
    %v1052 = vmul.f32 %v952, %v877
    %v1053 = vadd.f32 %v1051, %v1052
    %v1054 = vmul.f32 %v964, %v881
    %v1055 = vsub.f32 %v1053, %v1054
    %v1056 = vmul.f32 %v939, %v886
    %v1057 = vmul.f32 %v952, %v890
    %v1058 = vadd.f32 %v1056, %v1057
    %v1059 = vmul.f32 %v964, %v894
    %v1060 = vadd.f32 %v1058, %v1059
    %v1061 = vrot.slane %v988, 3
    %v1063 = vmul.f32 %v939, %v1061
    %v1064 = vrot.slane %v989, 3
    %v1066 = vmul.f32 %v952, %v1064
    %v1067 = vadd.f32 %v1063, %v1066
    %v1069 = vrot.slane %v984, 5
    %v1071 = vmul.f32 %v964, %v1069
    %v1072 = vadd.f32 %v1067, %v1071
    %v1073 = vadd.f32 %v1072, %v982
    %v1074 = vsub.f32 1.0, %v530
    %v1076 = vrot.slane %v1074, 7
    %v1078 = vmul.f32 %v221, %v1076
    %v1080 = vrot.slane %v840, 7
    %v1082 = vmul.f32 %v221, %v1080
    %v1083 = vsub.f32 0.0, %v840
    %v1085 = vrot.slane %v1078, 2
    %v1087 = vmul.f32 %v1083, %v1085
    %v1088 = vmul.f32 %v530, %v1085
    %v1090 = vrot.slane %v1087, 1
    %v1092 = vmul.f32 %v996, %v1090
    %v1094 = vrot.slane %v1088, 1
    %v1096 = vmul.f32 %v1005, %v1094
    %v1097 = vadd.f32 %v1092, %v1096
    %v1099 = vrot.slane %v1082, 3
    %v1101 = vmul.f32 %v1016, %v1099
    %v1102 = vadd.f32 %v1097, %v1101
    %v1103 = vadd.f32 %v1102, %v1028
    %v1104 = vmul.f32 %v1031, %v1090
    %v1105 = vmul.f32 %v1036, %v1094
    %v1106 = vadd.f32 %v1104, %v1105
    %v1107 = vmul.f32 %v1041, %v1099
    %v1108 = vadd.f32 %v1106, %v1107
    %v1109 = vadd.f32 %v1108, %v1047
    %v1110 = vrot.slane %v1087, 6
    %v1112 = vmul.f32 %v1050, %v1110
    %v1113 = vrot.slane %v1088, 6
    %v1115 = vmul.f32 %v1055, %v1113
    %v1116 = vadd.f32 %v1112, %v1115
    %v1117 = vmul.f32 %v1060, %v1082
    %v1118 = vadd.f32 %v1116, %v1117
    %v1119 = vadd.f32 %v1118, %v1073
    %v1120 = vrot.slane %v864, 7
    %v1123 = vrot.slane %v912, 5
    %v1126 = vrot.slane %v931, 4
    %v1129 = vrot.slane %v982, 6
    %v1132 = vrot.slane %v1028, 2
    %v1135 = vrot.slane %v1047, 1
    %v1138 = vrot.slane %v1073, 3
    %v1141 = vrot.slane %v1103, 7
    %v1144 = vrot.slane %v1109, 6
    %vm1146 = vcmask 1040384
    %v1147 = vsel %vm1146, %v861, %v1120
    %vm1148 = vcmask 1041408
    %v1149 = vsel %vm1148, %v1147, %v849
    %vm1150 = vcmask 1042432
    %v1151 = vsel %vm1150, %v1149, %v1123
    %v1152 = vsel %vm69, %v1151, %v1126
    %vm1153 = vcmask 1044480
    %v1154 = vsel %vm1153, %v1152, %v1129
    %vm1155 = vcmask 1045504
    %v1156 = vsel %vm1155, %v1154, %v1132
    %vm1157 = vcmask 1046528
    %v1158 = vsel %vm1157, %v1156, %v1135
    %v1159 = vsel %vm1146, %v1138, %v1141
    %v1160 = vsel %vm1148, %v1159, %v1144
    %v1161 = vsel %vm1150, %v1160, %v1119
    %1162 = vst [vmem:[#allocation2] sm:$0xff] %v1158
    %1163 = vst [vmem:[#allocation2 + $0x8] sm:$0xf] %v1161
    // Predicated region
    $region30: #{tpu_custom_call.1} parent=1 // pred_check
      _
    $region31: #{tpu_custom_call.1} parent=1 // pred_check_branch
      %1165 = sbr.rel (0) target = $region33
    $region32: #{tpu_custom_call.1} parent=1 // pred_region
      %1167 = vsyncadd [#allocation3], 0
      %s1168 = sshll.u32 [#allocation2], 4
      %s1169 = int_to_ptr.vmem [resolvable:$true] %s1168
      %s1170 = sshll.u32 %s7, 4
      %s1171 = int_to_ptr.hbm [resolvable:$true] %s1170
      %1176 = dma.vmem_to_hbm [thread:$0]  %s1169, 256, %s1171, [#allocation3], 128, 128, 8
    $region33: #{tpu_custom_call.1} parent=1 // pred_fallthru
      _
    // Predicated region
    $region34: #{tpu_custom_call.1} parent=1 // pred_check
      _
    $region35: #{tpu_custom_call.1} parent=1 // pred_check_branch
      %1178 = sbr.rel (0) target = $region37
    $region36: #{tpu_custom_call.1} parent=1 // pred_region
      %1180 = dma.done [#allocation3], 256
    $region37: #{tpu_custom_call.1} parent=1 // pred_fallthru
      _
    %1181 = vsyncpa [#allocation3], 1

</llo_original>
